<compile_context>
chip_gen: v5e
topology: v5e:2x2
jax: 0.10.0
libtpu: 0.0.40
codegen_flags: <defaults>
</compile_context>

<pallas_src>
import jax
import jax.numpy as jnp
from jax.experimental import pallas as pl
from jax.experimental.pallas import tpu as pltpu


def _uncertainty_kernel(losses_ref, params_ref, out_ref):
    # losses_ref: VMEM (1, N) f32
    # params_ref: VMEM (1, N) f32
    # out_ref:    SMEM (1, 1) f32 -- scalar total loss
    losses = losses_ref[...]
    params = params_ref[...]

    p_sq = params * params
    inv_p_sq = pl.reciprocal(p_sq)          # accurate reciprocal; EUP-path idiom
    # sign(l) * (0.5 / p^2) * |l| == 0.5 * l / p^2 (exact), so no abs/sign needed.
    weighted = 0.5 * losses * inv_p_sq
    reg = jnp.log1p(p_sq)

    out_ref[0, 0] = jnp.sum(weighted + reg)


def _forward_pallas(losses, params):
    n = losses.shape[0]
    assert params.shape[0] == n

    losses2d = losses.astype(jnp.float32).reshape(1, n)
    params2d = params.astype(jnp.float32).reshape(1, n)

    out = pl.pallas_call(
        _uncertainty_kernel,
        out_shape=jax.ShapeDtypeStruct((1, 1), jnp.float32),
        in_specs=[
            pl.BlockSpec(memory_space=pltpu.VMEM),
            pl.BlockSpec(memory_space=pltpu.VMEM),
        ],
        out_specs=pl.BlockSpec(memory_space=pltpu.SMEM),
        cost_estimate=pl.CostEstimate(
            flops=4 * n,
            transcendentals=2 * n,
            bytes_accessed=8 * n + 4,
        ),
    )(losses2d, params2d)
    return out[0, 0]


@jax.custom_vjp
def uncertainty_weighted(losses, params):
    """losses: (N,) f32 per-task scalar losses (may be negative); params: (N,) f32. Returns scalar."""
    return _forward_pallas(losses, params)


def _uw_fwd(losses, params):
    return _forward_pallas(losses, params), (losses, params)


def _uw_bwd(residuals, g):
    losses, params = residuals
    p_sq = params * params
    d_losses = g * (0.5 / p_sq)
    d_params = g * (-losses / (params * p_sq) + 2.0 * params / (1.0 + p_sq))
    return d_losses, d_params


uncertainty_weighted.defvjp(_uw_fwd, _uw_bwd)


def _reference(losses, params):
    # Mirrors the PyTorch forward() loop exactly (differentiable jnp ops).
    total = 0.0
    for i in range(losses.shape[0]):
        l = losses[i]
        abs_l = jnp.abs(l)
        w_abs = 0.5 / params[i] ** 2 * abs_l
        w = jnp.sign(l) * w_abs
        reg = jnp.log(1.0 + params[i] ** 2)
        total = total + w + reg
    return total


if __name__ == "__main__":
    key = jax.random.PRNGKey(0)
    num_tasks = 4
    # mix of positive losses and negative (reward-style) losses
    losses_list = jax.random.normal(key, (num_tasks,), dtype=jnp.float32) * 2.0
    # params initialized to 1.0, as in reset_parameters()
    params = jnp.ones((num_tasks,), dtype=jnp.float32)

    fn = jax.jit(uncertainty_weighted)
    result = jax.block_until_ready(fn(losses_list, params))

    ref = _reference(losses_list, params)
    assert jnp.allclose(result, ref, rtol=1e-5, atol=1e-5), (result, ref)

    # Gradient check: custom_vjp backward vs. autodiff through the jnp reference.
    g_kernel = jax.jit(jax.grad(uncertainty_weighted, argnums=(0, 1)))(losses_list, params)
    g_kernel = jax.block_until_ready(g_kernel)
    g_ref = jax.grad(_reference, argnums=(0, 1))(losses_list, params)
    assert jnp.allclose(g_kernel[0], g_ref[0], rtol=1e-5, atol=1e-5), (g_kernel[0], g_ref[0])
    assert jnp.allclose(g_kernel[1], g_ref[1], rtol=1e-5, atol=1e-5), (g_kernel[1], g_ref[1])

    print("KERNEL_OK")
</pallas_src>

<mosaic_0001>
module attributes {stable_mosaic.version = 11 : i64} {
  func.func @_uncertainty_kernel(%arg0: memref<1x4xf32, #tpu.memory_space<vmem>>, %arg1: memref<1x4xf32, #tpu.memory_space<vmem>>, %arg2: memref<1x1xf32, #tpu.memory_space<smem>>) attributes {dimension_semantics = [], scalar_prefetch = 0 : i64, scratch_operands = 0 : i64, tpu.core_type = #tpu.core_type<tc>} {
    %c0 = arith.constant 0 : index
    %c0_0 = arith.constant 0 : index
    %0 = vector.load %arg0[%c0, %c0_0] : memref<1x4xf32, #tpu.memory_space<vmem>>, vector<1x4xf32>
    %c0_1 = arith.constant 0 : index
    %c0_2 = arith.constant 0 : index
    %1 = vector.load %arg1[%c0_1, %c0_2] : memref<1x4xf32, #tpu.memory_space<vmem>>, vector<1x4xf32>
    %2 = arith.mulf %1, %1 : vector<1x4xf32>
    %3 = tpu.reciprocal %2 : vector<1x4xf32> -> vector<1x4xf32>
    %cst = arith.constant 5.000000e-01 : f32
    %4 = vector.broadcast %cst : f32 to vector<1x4xf32>
    %5 = arith.mulf %4, %0 : vector<1x4xf32>
    %6 = arith.mulf %5, %3 : vector<1x4xf32>
    %7 = math.log1p %2 : vector<1x4xf32>
    %8 = arith.addf %6, %7 : vector<1x4xf32>
    %9 = vector.shape_cast %8 : vector<1x4xf32> to vector<1x1x4xf32>
    %cst_3 = arith.constant dense<0.000000e+00> : vector<1xf32>
    %10 = vector.multi_reduction <add>, %9, %cst_3 [1, 2] : vector<1x1x4xf32> to vector<1xf32>
    %11 = vector.shape_cast %10 : vector<1xf32> to vector<1x1x1xf32>
    %12 = vector.extract %11[0, 0, 0] : f32 from vector<1x1x1xf32>
    %c0_4 = arith.constant 0 : index
    %c0_5 = arith.constant 0 : index
    %13 = memref.load %arg2[%c0_4, %c0_5] : memref<1x1xf32, #tpu.memory_space<smem>>
    memref.store %12, %arg2[%c0_4, %c0_5] : memref<1x1xf32, #tpu.memory_space<smem>>
    return
  }
}

</mosaic_0001>

<llo_original>
// kernel: uncertainty_weighted.1
$region0: #{uncertainty_weighted.1}
  #allocation0 [shape = 'u32[]', space=smem, size = 0x4, offset = 0x4, fixed_abs, tag = 'smem constant byte address 0x4 - core index']
  #allocation1 [shape = 'u32[72,128]{1,0:T(1,128)}', space=vmem, size = 0x9000, scoped, tag = 'internal scratch']
  %s0 = inlined_call_operand.vmem [shape: f32[1,4], index: 0, kind: input, shape index: {}]
  %s1 = inlined_call_operand.vmem [shape: f32[1,4], index: 1, kind: input, shape index: {}]
  %s2 = inlined_call_operand.hbm [shape: f32[1,1], index: 2, kind: output, shape index: {}]
  %s3 = sld [smem:[#allocation0]]
  $region18: #{uncertainty_weighted.1} parent=0
    _
  %s5 = ssub.s32 1, %s3
  %s6 = scalar_select 0, %s5, %s3
  $region1: #{uncertainty_weighted.1} parent=0
    #allocation2 [shape = 'u8[512]{0}', space=smem, size = 0x200, scoped, tag = 'output window, operand 0, single buffered']
    #allocation3 [shape = 's32[1]{0}', space=sflag, size = 0x4, scoped, tag = 'scoped memory for uncertainty_weighted.1']
    %7 = vsyncpa [#allocation3], 0
    // Predicated region
    $region2: #{uncertainty_weighted.1} parent=1 // pred_check
      _
    $region3: #{uncertainty_weighted.1} parent=1 // pred_check_branch
      %9 = sbr.rel (0) target = $region5
    $region4: #{uncertainty_weighted.1} parent=1 // pred_region
      _
    $region5: #{uncertainty_weighted.1} parent=1 // pred_fallthru
      _
    // Predicated region
    $region6: #{uncertainty_weighted.1} parent=1 // pred_check
      _
    $region7: #{uncertainty_weighted.1} parent=1 // pred_check_branch
      %11 = sbr.rel (0) target = $region9
    $region8: #{uncertainty_weighted.1} parent=1 // pred_region
      _
    $region9: #{uncertainty_weighted.1} parent=1 // pred_fallthru
      _
    %v12 = vld [vmem:[%s0] sm:$0x1]
    %v13 = vld [vmem:[%s1] sm:$0x1]
    %v14 = vmul.f32 %v13, %v13
    %v15 = vrcp.pop %v14
    %v16 = vmul.f32 %v14, %v15
    %v17 = vsub.f32 1.0, %v16
    %v18 = vmul.f32 %v15, %v17
    %v19 = vadd.f32 %v15, %v18
    %vm20 = vweird.f32 %v14
    %vm21 = vweird.f32 %v15
    %vm22 = vmor %vm20, %vm21
    %v23 = vsel %vm22, %v15, %v19
    %v24 = vand.u32 2147483647, %v14
    %vm25 = vcmp.eq.f32.partialorder %v24, 8.507059e+37
    %v26 = vand.u32 %v14, 2147483648
    %v27 = vor.u32 1.1754944e-38, %v26
    %v28 = vsel %vm25, %v27, %v23
    %v29 = vmul.f32 %v12, 0.5
    %v30 = vmul.f32 %v29, %v28
    %v31 = vadd.f32 %v14, 1.0
    %v32 = vlog2.pop %v31
    %v33 = vmul.f32 %v32, 0.6931472
    %v34 = vmul.f32 -0.5, %v14
    %v35 = vadd.f32 %v34, 1.0
    %v36 = vmul.f32 %v35, %v14
    %v37 = vand.u32 2147483647, %v14
    %vm38 = vcmp.lt.f32.partialorder %v37, 0.0004427343
    %v39 = vsel %vm38, %v36, %v33
    %v40 = vadd.f32 %v30, %v39
    %vm41 = vcmask 24576
    %v42 = vsel %vm41, %v40, 0.0
    %43 = vadd.xlane.f32.xlu0 %v42
    %v44 = vpop.xlane.xlu0 %43
    %v45 = vrot.slane %v44, 4
    %v46 = vadd.f32 %v44, %v45
    %v47 = vrot.slane %v46, 2
    %v48 = vadd.f32 %v46, %v47
    %v49 = vrot.slane %v48, 1
    %v50 = vadd.f32 %v48, %v49
    %s51 = vtos %v50
    %s52 = scalar_lea.smem [#allocation2], 0
    %53 = sst [smem:[%s52]] %s51
    // Predicated region
    $region10: #{uncertainty_weighted.1} parent=1 // pred_check
      _
    $region11: #{uncertainty_weighted.1} parent=1 // pred_check_branch
      %55 = sbr.rel (0) target = $region13
    $region12: #{uncertainty_weighted.1} parent=1 // pred_region
      %57 = vsyncadd [#allocation3], 0
      %s59 = sshll.u32 %s2, 4
      %s60 = int_to_ptr.hbm [resolvable:$true] %s59
      %62 = dma.smem_to_hbm [#allocation2], 16, %s60, [#allocation3]
    $region13: #{uncertainty_weighted.1} parent=1 // pred_fallthru
      _
    // Predicated region
    $region14: #{uncertainty_weighted.1} parent=1 // pred_check
      _
    $region15: #{uncertainty_weighted.1} parent=1 // pred_check_branch
      %64 = sbr.rel (0) target = $region17
    $region16: #{uncertainty_weighted.1} parent=1 // pred_region
      %66 = dma.done [#allocation3], 16
    $region17: #{uncertainty_weighted.1} parent=1 // pred_fallthru
      _
    %67 = sfence
    %68 = vsyncpa [#allocation3], 1

</llo_original>
